<compile_context>
chip_gen: v5e
topology: v5e:2x2
jax: 0.10.0
libtpu: 0.0.40
codegen_flags: <defaults>
</compile_context>

<pallas_src>
import math

import jax
import jax.numpy as jnp
from jax.experimental import pallas as pl
from jax.experimental.pallas import tpu as pltpu

LOG_STD_MIN = -20.0
LOG_STD_MAX = 2.0
LOG_STD_SCALE = 0.5 * (LOG_STD_MAX - LOG_STD_MIN)
LOG_STD_SHIFT = LOG_STD_MIN + LOG_STD_SCALE        # a*x + b form of the rescale
HALF_LOG_2PI = 0.5 * math.log(2.0 * math.pi)
LOG_2 = math.log(2.0)

LANE = 128
SUBLANE = 8


def _round_up(x, m):
    return (x + m - 1) // m * m


def _actor_kernel(state_ref, eps_ref,
                  w1_ref, b1_ref, w2_ref, b2_ref,
                  wh_ref, bh_ref,
                  out_ref):
    x = state_ref[...]                                   # [TB, obs]
    eps = eps_ref[...]                                   # [TB, A]
    a = eps.shape[-1]

    # act_net: Linear -> ReLU -> Linear -> ReLU
    h1 = jnp.maximum(
        jnp.dot(x, w1_ref[...], preferred_element_type=jnp.float32) + b1_ref[...], 0.0)
    h2 = jnp.maximum(
        jnp.dot(h1, w2_ref[...], preferred_element_type=jnp.float32) + b2_ref[...], 0.0)

    # fused heads: one matmul -> [TB, 2*A], static split into mu / log_std
    heads = jnp.dot(h2, wh_ref[...], preferred_element_type=jnp.float32) + bh_ref[...]
    mu = heads[:, :a]
    log_std = LOG_STD_SCALE * jnp.tanh(heads[:, a:2 * a]) + LOG_STD_SHIFT
    std = jnp.exp(log_std)

    # SquashedNormal rsample (reparameterized) and log_prob
    pre = mu + std * eps                                  # pre-tanh sample
    sample = jnp.tanh(pre)

    # Normal(mu, std).log_prob(pre) = -0.5*eps^2 - log_std - 0.5*log(2*pi)
    base_lp = -0.5 * (eps * eps) - log_std - HALF_LOG_2PI
    # TanhTransform.log_abs_det_jacobian(x, y) = 2*(log 2 - x - softplus(-2x))
    log_det = 2.0 * (LOG_2 - pre - jax.nn.softplus(-2.0 * pre))
    log_pi = jnp.sum(base_lp - log_det, axis=-1, keepdims=True)   # [TB, 1]

    mean_t = jnp.tanh(mu)

    # Single lane-dense output slab: [sample | mean | log_pi | zero pad]
    out_ref[...] = jnp.zeros_like(out_ref)
    out_ref[:, 0:a] = sample
    out_ref[:, a:2 * a] = mean_t
    out_ref[:, 2 * a:2 * a + 1] = log_pi


def actor_forward(state, eps, params, *, batch_tile=256):
    """state: [B, obs] f32, eps: [B, A] f32 standard-normal noise.

    Returns (sample [B, A], log_pi [B, 1], mean [B, A]).
    """
    state = jnp.asarray(state, jnp.float32)
    eps = jnp.asarray(eps, jnp.float32)
    b, obs = state.shape
    a = eps.shape[1]
    h0 = params["w1"].shape[1]
    h1 = params["w2"].shape[1]

    # Fuse head weights/biases; make biases 2-D [1, N].
    wh = jnp.concatenate([params["wm"], params["ws"]], axis=1)            # [h1, 2A]
    bh = jnp.concatenate([params["bm"], params["bs"]], axis=0).reshape(1, 2 * a)
    b1 = params["b1"].reshape(1, h0)
    b2 = params["b2"].reshape(1, h1)

    out_w = max(LANE, _round_up(2 * a + 1, LANE))

    # Batch tile: multiple of the f32 sublane count, capped at batch_tile rows.
    tb = min(_round_up(batch_tile, SUBLANE), _round_up(b, SUBLANE))
    b_pad = _round_up(b, tb)
    if b_pad != b:
        state = jnp.pad(state, ((0, b_pad - b), (0, 0)))
        eps = jnp.pad(eps, ((0, b_pad - b), (0, 0)))

    grid = (b_pad // tb,)

    def batch_spec(feat):
        return pl.BlockSpec((tb, feat), lambda i: (i, 0))

    def resident(shape):
        return pl.BlockSpec(shape, lambda i: (0, 0))

    out = pl.pallas_call(
        _actor_kernel,
        out_shape=jax.ShapeDtypeStruct((b_pad, out_w), jnp.float32),
        grid=grid,
        in_specs=[
            batch_spec(obs),            # state
            batch_spec(a),              # eps
            resident((obs, h0)), resident((1, h0)),      # w1, b1
            resident((h0, h1)), resident((1, h1)),       # w2, b2
            resident((h1, 2 * a)), resident((1, 2 * a)), # fused heads
        ],
        out_specs=batch_spec(out_w),
        compiler_params=pltpu.CompilerParams(
            dimension_semantics=("parallel",)),
    )(state, eps, params["w1"], b1, params["w2"], b2, wh, bh)

    sample = out[:b, 0:a]
    mean = out[:b, a:2 * a]
    log_pi = out[:b, 2 * a:2 * a + 1]
    return sample, log_pi, mean


def actor_reference(state, eps, params):
    """Pure-JAX reference mirroring the PyTorch Actor.forward semantics."""
    x = jnp.maximum(state @ params["w1"] + params["b1"], 0.0)
    x = jnp.maximum(x @ params["w2"] + params["b2"], 0.0)
    mu = x @ params["wm"] + params["bm"]
    log_std = jnp.tanh(x @ params["ws"] + params["bs"])
    log_std = LOG_STD_MIN + 0.5 * (LOG_STD_MAX - LOG_STD_MIN) * (log_std + 1.0)
    std = jnp.exp(log_std)
    pre = mu + std * eps
    sample = jnp.tanh(pre)
    base_lp = -0.5 * eps * eps - log_std - HALF_LOG_2PI
    log_det = 2.0 * (LOG_2 - pre - jax.nn.softplus(-2.0 * pre))
    log_pi = jnp.sum(base_lp - log_det, axis=-1, keepdims=True)
    return sample, log_pi, jnp.tanh(mu)


def init_params(key, obs_size, num_actions, hidden_size=(32, 32)):
    """Deterministic init mirroring nn.Linear shapes; weights stored [in, out]."""
    ks = jax.random.split(key, 8)

    def linear(kw, kb, fan_in, fan_out):
        bound = 1.0 / math.sqrt(fan_in)
        w = jax.random.uniform(kw, (fan_in, fan_out), jnp.float32, -bound, bound)
        b = jax.random.uniform(kb, (fan_out,), jnp.float32, -bound, bound)
        return w, b

    w1, b1 = linear(ks[0], ks[1], obs_size, hidden_size[0])
    w2, b2 = linear(ks[2], ks[3], hidden_size[0], hidden_size[1])
    wm, bm = linear(ks[4], ks[5], hidden_size[1], num_actions)
    ws, bs = linear(ks[6], ks[7], hidden_size[1], num_actions)
    return dict(w1=w1, b1=b1, w2=w2, b2=b2, wm=wm, bm=bm, ws=ws, bs=bs)


if __name__ == "__main__":
    key = jax.random.PRNGKey(0)
    k_state, k_eps, k_params = jax.random.split(key, 3)

    batch, obs_size, num_actions = 2, 8, 4
    hidden = (32, 32)

    state = jax.random.normal(k_state, (batch, obs_size), jnp.float32)
    # TODO(synk): torch's dist.rsample() draws noise internally; here the
    # standard-normal noise is supplied explicitly (reparameterization trick).
    eps = jax.random.normal(k_eps, (batch, num_actions), jnp.float32)
    params = init_params(k_params, obs_size, num_actions, hidden)

    sample, log_pi, mean = actor_forward(state, eps, params)
    jax.block_until_ready((sample, log_pi, mean))

    assert sample.shape == (batch, num_actions)
    assert log_pi.shape == (batch, 1)
    assert mean.shape == (batch, num_actions)

    ref_sample, ref_log_pi, ref_mean = actor_reference(state, eps, params)
    assert jnp.allclose(sample, ref_sample, atol=1e-3, rtol=1e-3)
    assert jnp.allclose(log_pi, ref_log_pi, atol=1e-3, rtol=1e-3)
    assert jnp.allclose(mean, ref_mean, atol=1e-3, rtol=1e-3)

    print("KERNEL_OK")
</pallas_src>

<mosaic_0001>
module attributes {stable_mosaic.version = 11 : i64} {
  func.func @_actor_kernel(%arg0: i32, %arg1: memref<8x8xf32, #tpu.memory_space<vmem>>, %arg2: memref<8x4xf32, #tpu.memory_space<vmem>>, %arg3: memref<8x32xf32, #tpu.memory_space<vmem>>, %arg4: memref<1x32xf32, #tpu.memory_space<vmem>>, %arg5: memref<32x32xf32, #tpu.memory_space<vmem>>, %arg6: memref<1x32xf32, #tpu.memory_space<vmem>>, %arg7: memref<32x8xf32, #tpu.memory_space<vmem>>, %arg8: memref<1x8xf32, #tpu.memory_space<vmem>>, %arg9: memref<8x128xf32, #tpu.memory_space<vmem>>) attributes {dimension_semantics = [#tpu.dimension_semantics<parallel>], iteration_bounds = array<i64: 1>, scalar_prefetch = 0 : i64, scratch_operands = 0 : i64, tpu.core_type = #tpu.core_type<tc>, window_params = [{transform_indices = @transform_0, window_bounds = array<i64: 8, 8>}, {transform_indices = @transform_1, window_bounds = array<i64: 8, 4>}, {pipeline_mode = #tpu.pipeline_mode<synchronous>, transform_indices = @transform_2, window_bounds = array<i64: 8, 32>}, {pipeline_mode = #tpu.pipeline_mode<synchronous>, transform_indices = @transform_3, window_bounds = array<i64: 1, 32>}, {pipeline_mode = #tpu.pipeline_mode<synchronous>, transform_indices = @transform_4, window_bounds = array<i64: 32, 32>}, {pipeline_mode = #tpu.pipeline_mode<synchronous>, transform_indices = @transform_5, window_bounds = array<i64: 1, 32>}, {pipeline_mode = #tpu.pipeline_mode<synchronous>, transform_indices = @transform_6, window_bounds = array<i64: 32, 8>}, {pipeline_mode = #tpu.pipeline_mode<synchronous>, transform_indices = @transform_7, window_bounds = array<i64: 1, 8>}, {transform_indices = @transform_8, window_bounds = array<i64: 8, 128>}]} {
    %c0 = arith.constant 0 : index
    %c0_0 = arith.constant 0 : index
    %0 = vector.load %arg1[%c0, %c0_0] : memref<8x8xf32, #tpu.memory_space<vmem>>, vector<8x8xf32>
    %c0_1 = arith.constant 0 : index
    %c0_2 = arith.constant 0 : index
    %1 = vector.load %arg2[%c0_1, %c0_2] : memref<8x4xf32, #tpu.memory_space<vmem>>, vector<8x4xf32>
    %c0_3 = arith.constant 0 : index
    %c0_4 = arith.constant 0 : index
    %2 = vector.load %arg3[%c0_3, %c0_4] : memref<8x32xf32, #tpu.memory_space<vmem>>, vector<8x32xf32>
    %cst = arith.constant dense<0.000000e+00> : vector<8x32xf32>
    %3 = tpu.matmul %0, %2, %cst {dimension_numbers = #tpu.dot_dimension_numbers<[1], [0], [0], [1], [0, 0, 1, 1], [], []>} : vector<8x8xf32>, vector<8x32xf32>, vector<8x32xf32> -> vector<8x32xf32>
    %c0_5 = arith.constant 0 : index
    %c0_6 = arith.constant 0 : index
    %4 = vector.load %arg4[%c0_5, %c0_6] : memref<1x32xf32, #tpu.memory_space<vmem>>, vector<1x32xf32>
    %5 = vector.broadcast %4 : vector<1x32xf32> to vector<8x32xf32>
    %6 = arith.addf %3, %5 : vector<8x32xf32>
    %cst_7 = arith.constant 0.000000e+00 : f32
    %7 = vector.broadcast %cst_7 : f32 to vector<8x32xf32>
    %8 = arith.maximumf %6, %7 : vector<8x32xf32>
    %c0_8 = arith.constant 0 : index
    %c0_9 = arith.constant 0 : index
    %9 = vector.load %arg5[%c0_8, %c0_9] : memref<32x32xf32, #tpu.memory_space<vmem>>, vector<32x32xf32>
    %cst_10 = arith.constant dense<0.000000e+00> : vector<8x32xf32>
    %10 = tpu.matmul %8, %9, %cst_10 {dimension_numbers = #tpu.dot_dimension_numbers<[1], [0], [0], [1], [0, 0, 1, 1], [], []>} : vector<8x32xf32>, vector<32x32xf32>, vector<8x32xf32> -> vector<8x32xf32>
    %c0_11 = arith.constant 0 : index
    %c0_12 = arith.constant 0 : index
    %11 = vector.load %arg6[%c0_11, %c0_12] : memref<1x32xf32, #tpu.memory_space<vmem>>, vector<1x32xf32>
    %12 = vector.broadcast %11 : vector<1x32xf32> to vector<8x32xf32>
    %13 = arith.addf %10, %12 : vector<8x32xf32>
    %cst_13 = arith.constant 0.000000e+00 : f32
    %14 = vector.broadcast %cst_13 : f32 to vector<8x32xf32>
    %15 = arith.maximumf %13, %14 : vector<8x32xf32>
    %c0_14 = arith.constant 0 : index
    %c0_15 = arith.constant 0 : index
    %16 = vector.load %arg7[%c0_14, %c0_15] : memref<32x8xf32, #tpu.memory_space<vmem>>, vector<32x8xf32>
    %cst_16 = arith.constant dense<0.000000e+00> : vector<8x8xf32>
    %17 = tpu.matmul %15, %16, %cst_16 {dimension_numbers = #tpu.dot_dimension_numbers<[1], [0], [0], [1], [0, 0, 1, 1], [], []>} : vector<8x32xf32>, vector<32x8xf32>, vector<8x8xf32> -> vector<8x8xf32>
    %c0_17 = arith.constant 0 : index
    %c0_18 = arith.constant 0 : index
    %18 = vector.load %arg8[%c0_17, %c0_18] : memref<1x8xf32, #tpu.memory_space<vmem>>, vector<1x8xf32>
    %19 = vector.broadcast %18 : vector<1x8xf32> to vector<8x8xf32>
    %20 = arith.addf %17, %19 : vector<8x8xf32>
    %21 = vector.extract_strided_slice %20 {offsets = [0, 0], sizes = [8, 4], strides = [1, 1]} : vector<8x8xf32> to vector<8x4xf32>
    %22 = vector.extract_strided_slice %20 {offsets = [0, 4], sizes = [8, 4], strides = [1, 1]} : vector<8x8xf32> to vector<8x4xf32>
    %23 = math.tanh %22 : vector<8x4xf32>
    %cst_19 = arith.constant 1.100000e+01 : f32
    %24 = vector.broadcast %cst_19 : f32 to vector<8x4xf32>
    %25 = arith.mulf %24, %23 : vector<8x4xf32>
    %cst_20 = arith.constant -9.000000e+00 : f32
    %26 = vector.broadcast %cst_20 : f32 to vector<8x4xf32>
    %27 = arith.addf %25, %26 : vector<8x4xf32>
    %28 = math.exp %27 : vector<8x4xf32>
    %29 = arith.mulf %28, %1 : vector<8x4xf32>
    %30 = arith.addf %21, %29 : vector<8x4xf32>
    %31 = math.tanh %30 : vector<8x4xf32>
    %32 = arith.mulf %1, %1 : vector<8x4xf32>
    %cst_21 = arith.constant -5.000000e-01 : f32
    %33 = vector.broadcast %cst_21 : f32 to vector<8x4xf32>
    %34 = arith.mulf %33, %32 : vector<8x4xf32>
    %35 = arith.subf %34, %27 : vector<8x4xf32>
    %cst_22 = arith.constant 0.918938517 : f32
    %36 = vector.broadcast %cst_22 : f32 to vector<8x4xf32>
    %37 = arith.subf %35, %36 : vector<8x4xf32>
    %cst_23 = arith.constant 0.693147182 : f32
    %38 = vector.broadcast %cst_23 : f32 to vector<8x4xf32>
    %39 = arith.subf %38, %30 : vector<8x4xf32>
    %cst_24 = arith.constant -2.000000e+00 : f32
    %40 = vector.broadcast %cst_24 : f32 to vector<8x4xf32>
    %41 = arith.mulf %40, %30 : vector<8x4xf32>
    %cst_25 = arith.constant 0.000000e+00 : f32
    %42 = vector.broadcast %cst_25 : f32 to vector<8x4xf32>
    %43 = arith.maximumf %41, %42 : vector<8x4xf32>
    %44 = vector.broadcast %cst_25 : f32 to vector<8x4xf32>
    %45 = arith.subf %41, %44 : vector<8x4xf32>
    %46 = arith.cmpf one, %45, %45 : vector<8x4xf32>
    %47 = vector.broadcast %cst_25 : f32 to vector<8x4xf32>
    %48 = arith.addf %41, %47 : vector<8x4xf32>
    %49 = math.absf %45 : vector<8x4xf32>
    %cst_26 = arith.constant 0.000000e+00 : f32
    %50 = vector.broadcast %cst_26 : f32 to vector<8x4xf32>
    %51 = arith.subf %50, %49 : vector<8x4xf32>
    %52 = math.exp %51 : vector<8x4xf32>
    %53 = math.log1p %52 : vector<8x4xf32>
    %54 = arith.addf %43, %53 : vector<8x4xf32>
    %55 = arith.select %46, %48, %54 : vector<8x4xi1>, vector<8x4xf32>
    %56 = arith.subf %39, %55 : vector<8x4xf32>
    %cst_27 = arith.constant 2.000000e+00 : f32
    %57 = vector.broadcast %cst_27 : f32 to vector<8x4xf32>
    %58 = arith.mulf %57, %56 : vector<8x4xf32>
    %59 = arith.subf %37, %58 : vector<8x4xf32>
    %cst_28 = arith.constant dense<0.000000e+00> : vector<8xf32>
    %60 = vector.multi_reduction <add>, %59, %cst_28 [1] : vector<8x4xf32> to vector<8xf32>
    %61 = vector.shape_cast %60 : vector<8xf32> to vector<8x1xf32>
    %62 = math.tanh %21 : vector<8x4xf32>
    %cst_29 = arith.constant 0.000000e+00 : f32
    %63 = vector.broadcast %cst_29 : f32 to vector<8x128xf32>
    %c0_30 = arith.constant 0 : index
    %c0_31 = arith.constant 0 : index
    %64 = vector.load %arg9[%c0_30, %c0_31] : memref<8x128xf32, #tpu.memory_space<vmem>>, vector<8x128xf32>
    tpu.vector_store %arg9[%c0_30, %c0_31], %63 {strides = array<i32>} : memref<8x128xf32, #tpu.memory_space<vmem>>, vector<8x128xf32>,
    %c0_32 = arith.constant 0 : index
    %c0_33 = arith.constant 0 : index
    %65 = vector.load %arg9[%c0_32, %c0_33] : memref<8x128xf32, #tpu.memory_space<vmem>>, vector<8x4xf32>
    tpu.vector_store %arg9[%c0_32, %c0_33], %31 {strides = array<i32>} : memref<8x128xf32, #tpu.memory_space<vmem>>, vector<8x4xf32>,
    %c0_34 = arith.constant 0 : index
    %c4 = arith.constant 4 : index
    %66 = vector.load %arg9[%c0_34, %c4] : memref<8x128xf32, #tpu.memory_space<vmem>>, vector<8x4xf32>
    tpu.vector_store %arg9[%c0_34, %c4], %62 {strides = array<i32>} : memref<8x128xf32, #tpu.memory_space<vmem>>, vector<8x4xf32>,
    %c0_35 = arith.constant 0 : index
    %c8 = arith.constant 8 : index
    %67 = vector.load %arg9[%c0_35, %c8] : memref<8x128xf32, #tpu.memory_space<vmem>>, vector<8x1xf32>
    tpu.vector_store %arg9[%c0_35, %c8], %61 {strides = array<i32>} : memref<8x128xf32, #tpu.memory_space<vmem>>, vector<8x1xf32>,
    return
  }
  func.func @transform_0(%arg0: i32) -> (i32, i32) {
    %c0_i32 = arith.constant 0 : i32
    %c0_i32_0 = arith.constant 0 : i32
    return %arg0, %c0_i32 : i32, i32
  }
  func.func @transform_1(%arg0: i32) -> (i32, i32) {
    %c0_i32 = arith.constant 0 : i32
    %c0_i32_0 = arith.constant 0 : i32
    return %arg0, %c0_i32 : i32, i32
  }
  func.func @transform_2(%arg0: i32) -> (i32, i32) {
    %c0_i32 = arith.constant 0 : i32
    %c0_i32_0 = arith.constant 0 : i32
    %c0_i32_1 = arith.constant 0 : i32
    return %c0_i32, %c0_i32_0 : i32, i32
  }
  func.func @transform_3(%arg0: i32) -> (i32, i32) {
    %c0_i32 = arith.constant 0 : i32
    %c0_i32_0 = arith.constant 0 : i32
    %c0_i32_1 = arith.constant 0 : i32
    return %c0_i32, %c0_i32_0 : i32, i32
  }
  func.func @transform_4(%arg0: i32) -> (i32, i32) {
    %c0_i32 = arith.constant 0 : i32
    %c0_i32_0 = arith.constant 0 : i32
    %c0_i32_1 = arith.constant 0 : i32
    return %c0_i32, %c0_i32_0 : i32, i32
  }
  func.func @transform_5(%arg0: i32) -> (i32, i32) {
    %c0_i32 = arith.constant 0 : i32
    %c0_i32_0 = arith.constant 0 : i32
    %c0_i32_1 = arith.constant 0 : i32
    return %c0_i32, %c0_i32_0 : i32, i32
  }
  func.func @transform_6(%arg0: i32) -> (i32, i32) {
    %c0_i32 = arith.constant 0 : i32
    %c0_i32_0 = arith.constant 0 : i32
    %c0_i32_1 = arith.constant 0 : i32
    return %c0_i32, %c0_i32_0 : i32, i32
  }
  func.func @transform_7(%arg0: i32) -> (i32, i32) {
    %c0_i32 = arith.constant 0 : i32
    %c0_i32_0 = arith.constant 0 : i32
    %c0_i32_1 = arith.constant 0 : i32
    return %c0_i32, %c0_i32_0 : i32, i32
  }
  func.func @transform_8(%arg0: i32) -> (i32, i32) {
    %c0_i32 = arith.constant 0 : i32
    %c0_i32_0 = arith.constant 0 : i32
    return %arg0, %c0_i32 : i32, i32
  }
}

</mosaic_0001>

<llo_original>
// kernel: tpu_custom_call.1
$region0: #{tpu_custom_call.1}
  #allocation0 [shape = 'u32[]', space=smem, size = 0x4, offset = 0x4, fixed_abs, tag = 'smem constant byte address 0x4 - core index']
  #allocation1 [shape = 'u32[72,128]{1,0:T(1,128)}', space=vmem, size = 0x9000, scoped, tag = 'internal scratch']
  %s0 = inlined_call_operand.vmem [shape: f32[8,8], index: 0, kind: input, shape index: {}]
  %s1 = inlined_call_operand.vmem [shape: f32[8,4], index: 1, kind: input, shape index: {}]
  %s2 = inlined_call_operand.hbm [shape: f32[8,32], index: 2, kind: input, shape index: {}]
  %s3 = inlined_call_operand.vmem [shape: f32[1,32], index: 3, kind: input, shape index: {}]
  %s4 = inlined_call_operand.vmem [shape: f32[32,32], index: 4, kind: input, shape index: {}]
  %s5 = inlined_call_operand.vmem [shape: f32[1,32], index: 5, kind: input, shape index: {}]
  %s6 = inlined_call_operand.vmem [shape: f32[32,8], index: 6, kind: input, shape index: {}]
  %s7 = inlined_call_operand.vmem [shape: f32[1,8], index: 7, kind: input, shape index: {}]
  %s8 = inlined_call_operand.hbm [shape: f32[8,128], index: 8, kind: output, shape index: {}]
  %s9 = sld [smem:[#allocation0]]
  $region46: #{tpu_custom_call.1} parent=0
    _
  %s11 = ssub.s32 1, %s9
  %s12 = scalar_select 0, %s11, %s9
  $region1: #{tpu_custom_call.1} parent=0
    #allocation2 [shape = 'u8[4096]{0}', space=vmem, size = 0x1000, scoped, tag = 'input window, operand 2, single buffered']
    #allocation3 [shape = 's32[1]{0}', space=sflag, size = 0x4, scoped, tag = 'scoped memory for tpu_custom_call.1']
    #allocation4 [shape = 's32[1]{0}', space=sflag, size = 0x4, scoped, tag = 'scoped memory for tpu_custom_call.1']
    #allocation5 [shape = 'u8[4096]{0}', space=vmem, size = 0x1000, scoped, tag = 'output window, operand 0, single buffered']
    %13 = vsyncpa [#allocation3], 0
    %14 = vsyncpa [#allocation4], 0
    // Predicated region
    $region2: #{tpu_custom_call.1} parent=1 // pred_check
      _
    $region3: #{tpu_custom_call.1} parent=1 // pred_check_branch
      %16 = sbr.rel (0) target = $region5
    $region4: #{tpu_custom_call.1} parent=1 // pred_region
      _
    $region5: #{tpu_custom_call.1} parent=1 // pred_fallthru
      _
    // Predicated region
    $region6: #{tpu_custom_call.1} parent=1 // pred_check
      _
    $region7: #{tpu_custom_call.1} parent=1 // pred_check_branch
      %18 = sbr.rel (0) target = $region9
    $region8: #{tpu_custom_call.1} parent=1 // pred_region
      _
    $region9: #{tpu_custom_call.1} parent=1 // pred_fallthru
      _
    // Predicated region
    $region10: #{tpu_custom_call.1} parent=1 // pred_check
      _
    $region11: #{tpu_custom_call.1} parent=1 // pred_check_branch
      %20 = sbr.rel (0) target = $region13
    $region12: #{tpu_custom_call.1} parent=1 // pred_region
      %22 = vsyncadd [#allocation3], 0
      %s24 = sshll.u32 %s2, 4
      %s25 = int_to_ptr.hbm [resolvable:$true] %s24
      %s26 = sshll.u32 [#allocation2], 4
      %s27 = int_to_ptr.vmem [resolvable:$true] %s26
      %29 = dma.hbm_to_vmem [thread:$0]  %s25, 128, %s27, [#allocation3]
    $region13: #{tpu_custom_call.1} parent=1 // pred_fallthru
      _
    // Predicated region
    $region14: #{tpu_custom_call.1} parent=1 // pred_check
      _
    $region15: #{tpu_custom_call.1} parent=1 // pred_check_branch
      %31 = sbr.rel (0) target = $region17
    $region16: #{tpu_custom_call.1} parent=1 // pred_region
      _
    $region17: #{tpu_custom_call.1} parent=1 // pred_fallthru
      _
    // Predicated region
    $region18: #{tpu_custom_call.1} parent=1 // pred_check
      _
    $region19: #{tpu_custom_call.1} parent=1 // pred_check_branch
      %33 = sbr.rel (0) target = $region21
    $region20: #{tpu_custom_call.1} parent=1 // pred_region
      _
    $region21: #{tpu_custom_call.1} parent=1 // pred_fallthru
      _
    // Predicated region
    $region22: #{tpu_custom_call.1} parent=1 // pred_check
      _
    $region23: #{tpu_custom_call.1} parent=1 // pred_check_branch
      %35 = sbr.rel (0) target = $region25
    $region24: #{tpu_custom_call.1} parent=1 // pred_region
      _
    $region25: #{tpu_custom_call.1} parent=1 // pred_fallthru
      _
    // Predicated region
    $region26: #{tpu_custom_call.1} parent=1 // pred_check
      _
    $region27: #{tpu_custom_call.1} parent=1 // pred_check_branch
      %37 = sbr.rel (0) target = $region29
    $region28: #{tpu_custom_call.1} parent=1 // pred_region
      _
    $region29: #{tpu_custom_call.1} parent=1 // pred_fallthru
      _
    // Predicated region
    $region30: #{tpu_custom_call.1} parent=1 // pred_check
      _
    $region31: #{tpu_custom_call.1} parent=1 // pred_check_branch
      %39 = sbr.rel (0) target = $region33
    $region32: #{tpu_custom_call.1} parent=1 // pred_region
      _
    $region33: #{tpu_custom_call.1} parent=1 // pred_fallthru
      _
    // Predicated region
    $region34: #{tpu_custom_call.1} parent=1 // pred_check
      _
    $region35: #{tpu_custom_call.1} parent=1 // pred_check_branch
      %41 = sbr.rel (0) target = $region37
    $region36: #{tpu_custom_call.1} parent=1 // pred_region
      %43 = dma.done [#allocation3], 128
    $region37: #{tpu_custom_call.1} parent=1 // pred_fallthru
      _
    %v44 = vld [vmem:[%s0] sm:$0xff]
    %v45 = vld [vmem:[%s1] sm:$0xff]
    %v46 = vld [vmem:[#allocation2] sm:$0xff]
    %v47 = vld [vmem:[%s3] sm:$0x1]
    %v49 = vperm.slane %v47, 0
    %vm51 = vcmask 64512
    %v53 = vsel %vm51, %v44, 0
    %55 = vmatpush.msra.mxu0 0.0
    %56 = vmatpush.msra.mxu0 0.0
    %57 = vmatpush.msra.mxu0 0.0
    %58 = vmatpush.msra.mxu0 0.0
    %59 = vmatpush.msra.mxu0 0.0
    %60 = vmatpush.msra.mxu0 0.0
    %61 = vmatpush.msra.mxu0 0.0
    %62 = vmatpush.msra.mxu0 0.0
    %63 = vmatpush.msra.mxu0 0.0
    %64 = vmatpush.msra.mxu0 0.0
    %65 = vmatpush.msra.mxu0 0.0
    %66 = vmatpush.msra.mxu0 0.0
    %67 = vmatpush.msra.mxu0 0.0
    %68 = vmatpush.msra.mxu0 0.0
    %69 = vmatpush.msra.mxu0 0.0
    %70 = vmatpush.msra.mxu0 %v46
    %71 = vmatmul.f32.gmra.mxu0 %v53
    %v72 = vpop.f32.mrf.mxu0
    %v73 = vadd.f32 %v49, %v72
    %74 = vdwg.mxu0
    %v75 = vmax.f32 %v73, 0.0
    %v76 = vld [vmem:[%s4] sm:$0xff]
    %v77 = vld [vmem:[%s4 + $0x8] sm:$0xff]
    %v78 = vld [vmem:[%s4 + $0x10] sm:$0xff]
    %v79 = vld [vmem:[%s4 + $0x18] sm:$0xff]
    %v80 = vld [vmem:[%s5] sm:$0x1]
    %v82 = vperm.slane %v80, 0
    %vm84 = vcmask 261120
    %v86 = vsel %vm84, %v75, 0
    %88 = vmatpush.msra.mxu0 0.0
    %89 = vmatpush.msra.mxu0 0.0
    %90 = vmatpush.msra.mxu0 0.0
    %91 = vmatpush.msra.mxu0 0.0
    %92 = vmatpush.msra.mxu0 0.0
    %93 = vmatpush.msra.mxu0 0.0
    %94 = vmatpush.msra.mxu0 0.0
    %95 = vmatpush.msra.mxu0 0.0
    %96 = vmatpush.msra.mxu0 0.0
    %97 = vmatpush.msra.mxu0 0.0
    %98 = vmatpush.msra.mxu0 0.0
    %99 = vmatpush.msra.mxu0 0.0
    %100 = vmatpush.msra.mxu0 %v79
    %101 = vmatpush.msra.mxu0 %v78
    %102 = vmatpush.msra.mxu0 %v77
    %103 = vmatpush.msra.mxu0 %v76
    %104 = vmatmul.f32.gmra.mxu0 %v86
    %v105 = vpop.f32.mrf.mxu0
    %v106 = vadd.f32 %v82, %v105
    %107 = vdwg.mxu0
    %v108 = vmax.f32 %v106, 0.0
    %v109 = vld [vmem:[%s6] sm:$0xff]
    %v110 = vld [vmem:[%s6 + $0x8] sm:$0xff]
    %v111 = vld [vmem:[%s6 + $0x10] sm:$0xff]
    %v112 = vld [vmem:[%s6 + $0x18] sm:$0xff]
    %v113 = vld [vmem:[%s7] sm:$0x1]
    %v115 = vperm.slane %v113, 0
    %v118 = vsel %vm84, %v108, 0
    %120 = vmatpush.msra.mxu0 0.0
    %121 = vmatpush.msra.mxu0 0.0
    %122 = vmatpush.msra.mxu0 0.0
    %123 = vmatpush.msra.mxu0 0.0
    %124 = vmatpush.msra.mxu0 0.0
    %125 = vmatpush.msra.mxu0 0.0
    %126 = vmatpush.msra.mxu0 0.0
    %127 = vmatpush.msra.mxu0 0.0
    %128 = vmatpush.msra.mxu0 0.0
    %129 = vmatpush.msra.mxu0 0.0
    %130 = vmatpush.msra.mxu0 0.0
    %131 = vmatpush.msra.mxu0 0.0
    %132 = vmatpush.msra.mxu0 %v112
    %133 = vmatpush.msra.mxu0 %v111
    %134 = vmatpush.msra.mxu0 %v110
    %135 = vmatpush.msra.mxu0 %v109
    %136 = vmatmul.f32.gmra.mxu0 %v118
    %v137 = vpop.f32.mrf.mxu0
    %v138 = vadd.f32 %v115, %v137
    %139 = vdwg.mxu0
    %v140 = vtanh.pop %v138
    %v141 = vmul.f32 %v140, 11.0
    %v142 = vadd.f32 %v141, -9.0
    %v143 = vmul.f32 %v142, 1.442695
    %v144 = vpow.pop %v143
    %146 = vrot.lane.b32.xlu0 %v45, 4
    %v147 = vpop.permute.xlu0 %146
    %v149 = vmul.f32 %v144, %v147
    %151 = vrot.lane.b32.xlu0 %v149, 124
    %v152 = vpop.permute.xlu0 %151
    %v154 = vadd.f32 %v138, %v152
    %v155 = vtanh.pop %v154
    %v156 = vmul.f32 %v45, %v45
    %v157 = vmul.f32 %v156, -0.5
    %159 = vrot.lane.b32.xlu0 %v142, 124
    %v160 = vpop.permute.xlu0 %159
    %v162 = vsub.f32 %v157, %v160
    %v163 = vsub.f32 %v162, 0.9189385
    %v164 = vsub.f32 0.6931472, %v154
    %v165 = vmul.f32 %v154, -2.0
    %v166 = vmax.f32 %v165, 0.0
    %vm167 = vcmp.ne.f32.partialorder %v165, %v165
    %v168 = vadd.f32 %v165, 0.0
    %v169 = vand.u32 2147483647, %v165
    %v170 = vsub.f32 0.0, %v169
    %v171 = vmul.f32 %v170, 1.442695
    %v172 = vpow.pop %v171
    %v173 = vadd.f32 %v172, 1.0
    %v174 = vlog2.pop %v173
    %v175 = vmul.f32 %v174, 0.6931472
    %v176 = vmul.f32 -0.5, %v172
    %v177 = vadd.f32 %v176, 1.0
    %v178 = vmul.f32 %v177, %v172
    %v179 = vand.u32 2147483647, %v172
    %vm180 = vcmp.lt.f32.partialorder %v179, 0.0004427343
    %v181 = vsel %vm180, %v178, %v175
    %v182 = vadd.f32 %v166, %v181
    %v183 = vsel %vm167, %v168, %v182
    %v184 = vsub.f32 %v164, %v183
    %v185 = vmul.f32 %v184, 2.0
    %v186 = vsub.f32 %v163, %v185
    %vm187 = vcmask 31744
    %v188 = vsel %vm187, %v186, 0.0
    %189 = vadd.xlane.f32.xlu0 %v188
    %v190 = vpop.xlane.xlu0 %189
    %191 = vst [vmem:[#allocation5] sm:$0xff] 0.0
    %192 = vst.msk [vmem:[#allocation5] sm:$0xff] %vm187, %v155
    %194 = vrot.lane.b32.xlu0 %v140, 4
    %v195 = vpop.permute.xlu0 %194
    %vm197 = vcmask 64544
    %198 = vst.msk [vmem:[#allocation5] sm:$0xff] %vm197, %v195
    %vm199 = vcmask 72768
    %200 = vst.msk [vmem:[#allocation5] sm:$0xff] %vm199, %v190
    // Predicated region
    $region38: #{tpu_custom_call.1} parent=1 // pred_check
      _
    $region39: #{tpu_custom_call.1} parent=1 // pred_check_branch
      %202 = sbr.rel (0) target = $region41
    $region40: #{tpu_custom_call.1} parent=1 // pred_region
      %204 = vsyncadd [#allocation4], 0
      %s206 = sshll.u32 [#allocation5], 4
      %s207 = int_to_ptr.vmem [resolvable:$true] %s206
      %s208 = sshll.u32 %s8, 4
      %s209 = int_to_ptr.hbm [resolvable:$true] %s208
      %211 = dma.vmem_to_hbm [thread:$0]  %s207, 128, %s209, [#allocation4]
    $region41: #{tpu_custom_call.1} parent=1 // pred_fallthru
      _
    // Predicated region
    $region42: #{tpu_custom_call.1} parent=1 // pred_check
      _
    $region43: #{tpu_custom_call.1} parent=1 // pred_check_branch
      %213 = sbr.rel (0) target = $region45
    $region44: #{tpu_custom_call.1} parent=1 // pred_region
      %215 = dma.done [#allocation4], 128
    $region45: #{tpu_custom_call.1} parent=1 // pred_fallthru
      _
    %216 = vsyncpa [#allocation3], 1
    %217 = vsyncpa [#allocation4], 1

</llo_original>
